<compile_context>
chip_gen: v7x
topology: tpu7x:2x2x1
jax: 0.10.0
libtpu: 0.0.40
codegen_flags: <defaults>
</compile_context>

<pallas_src>
import functools
import math

import jax
import jax.numpy as jnp
from jax.experimental import pallas as pl
from jax.experimental.pallas import tpu as pltpu


# --------------------------- small config helpers ---------------------------

@functools.lru_cache(maxsize=None)
def _vmem_limit():
    """Scoped-VMEM budget: ~half of physical VMEM, clamped to [32, 100] MiB."""
    cap = 128 * 1024 * 1024
    try:
        cap = int(getattr(pltpu.get_tpu_info(), "vmem_capacity_bytes", cap))
    except Exception:
        pass
    return int(min(100 << 20, max(32 << 20, cap // 2)))


@functools.lru_cache(maxsize=None)
def _buffered_single_mode():
    """pl.Buffered(1) if this JAX/Pallas supports single-buffered operands."""
    try:
        try:
            mode = pl.Buffered(1)
        except TypeError:
            mode = pl.Buffered(buffer_count=1)

        def _probe(x_ref, o_ref):
            o_ref[...] = x_ref[...]

        out = pl.pallas_call(
            _probe,
            out_shape=jax.ShapeDtypeStruct((16, 128), jnp.float32),
            grid=(2,),
            in_specs=[pl.BlockSpec((8, 128), lambda i: (0, 0),
                                   pipeline_mode=mode)],
            out_specs=pl.BlockSpec((8, 128), lambda i: (i, 0)),
        )(jnp.zeros((8, 128), jnp.float32))
        jax.block_until_ready(out)
        return mode
    except Exception:
        return None


def _const_spec(block_shape, index_map):
    """BlockSpec for operands whose index_map is constant across the grid:
    single-buffer them (they are DMA'd exactly once) when supported."""
    mode = _buffered_single_mode()
    if mode is None:
        return pl.BlockSpec(block_shape, index_map)
    return pl.BlockSpec(block_shape, index_map, pipeline_mode=mode)


# ----------------------------- Pallas kernels ------------------------------

def _emb_ln_kernel(w_ref, pt_ref, g_ref, b_ref, o_ref, *, eps):
    # word embeddings + (position + token-type) rows, then LayerNorm (1 pass).
    h = w_ref[0].astype(jnp.float32) + pt_ref[...]
    mu = jnp.mean(h, axis=-1, keepdims=True)
    var = jnp.mean(h * h, axis=-1, keepdims=True) - mu * mu
    o_ref[0] = ((h - mu) * jax.lax.rsqrt(var + eps) * g_ref[...]
                + b_ref[...]).astype(o_ref.dtype)


def embed_layernorm(word, pos_type, gamma, beta, eps=1e-12):
    B, S, H = word.shape
    return pl.pallas_call(
        functools.partial(_emb_ln_kernel, eps=eps),
        out_shape=jax.ShapeDtypeStruct((B, S, H), jnp.bfloat16),
        grid=(B,),
        in_specs=[pl.BlockSpec((1, S, H), lambda b: (b, 0, 0)),
                  _const_spec((S, H), lambda b: (0, 0)),
                  _const_spec((1, H), lambda b: (0, 0)),
                  _const_spec((1, H), lambda b: (0, 0))],
        out_specs=pl.BlockSpec((1, S, H), lambda b: (b, 0, 0)),
        compiler_params=pltpu.CompilerParams(dimension_semantics=("parallel",)),
    )(word, pos_type, gamma.reshape(1, H), beta.reshape(1, H))


def _fused_attn_kernel(x_ref, w_ref, b_ref, m_ref, o_ref, *, nH, dh, scale):
    # Fused QKV projection + multi-head self-attention for one batch element.
    x = x_ref[0]                                  # [S, H] bf16
    bias = m_ref[...]                             # [1, S] f32 additive key mask
    pieces = []
    for p in range(nH // 2):                      # head pairs: 128-lane aligned
        c0 = p * 6 * dh
        qkv = (jnp.dot(x, w_ref[:, c0:c0 + 6 * dh],
                       preferred_element_type=jnp.float32)
               + b_ref[:, c0:c0 + 6 * dh]).astype(jnp.bfloat16)   # [S, 6*dh]
        ctx = []
        for j in range(2):                        # the two heads of this pair
            q = qkv[:, j * dh:(j + 1) * dh]
            k = qkv[:, 2 * dh + j * dh:2 * dh + (j + 1) * dh]
            v = qkv[:, 4 * dh + j * dh:4 * dh + (j + 1) * dh]
            s = jax.lax.dot_general(
                q, k, (((1,), (1,)), ((), ())),
                preferred_element_type=jnp.float32) * scale       # [S, S]
            s = s + bias
            s = s - jnp.max(s, axis=-1, keepdims=True)
            pr = jnp.exp(s)
            pr = pr * pl.reciprocal(jnp.sum(pr, axis=-1, keepdims=True),
                                    approx=True)
            # cast PV output to bf16 immediately (bounds live f32 ranges)
            ctx.append(jnp.dot(pr.astype(jnp.bfloat16), v,
                               preferred_element_type=jnp.float32
                               ).astype(jnp.bfloat16))
        pieces.append(jnp.concatenate(ctx, axis=-1))              # [S, 128] bf16
    # single lane-dense [S, H] store, heads in original order
    o_ref[0] = jnp.concatenate(pieces, axis=-1)


def fused_attention(x, wqkv_pm, bqkv_pm, mask_bias, nH, dh, vmem_limit=None):
    B, S, H = x.shape
    kern = functools.partial(_fused_attn_kernel, nH=nH, dh=dh,
                             scale=1.0 / math.sqrt(dh))
    return pl.pallas_call(
        kern,
        out_shape=jax.ShapeDtypeStruct((B, S, H), jnp.bfloat16),
        grid=(B,),
        in_specs=[
            pl.BlockSpec((1, S, H), lambda b: (b, 0, 0)),
            _const_spec((H, 3 * H), lambda b: (0, 0)),     # resident wqkv
            _const_spec((1, 3 * H), lambda b: (0, 0)),
            pl.BlockSpec((1, S), lambda b: (b, 0)),
        ],
        out_specs=pl.BlockSpec((1, S, H), lambda b: (b, 0, 0)),
        compiler_params=pltpu.CompilerParams(
            dimension_semantics=("parallel",),
            vmem_limit_bytes=vmem_limit),
    )(x, wqkv_pm, bqkv_pm.reshape(1, 3 * H).astype(jnp.float32), mask_bias)


def _matmul_res_ln_kernel(x_ref, w_ref, b_ref, r_ref, g_ref, be_ref, o_ref,
                          *, eps):
    y = jnp.dot(x_ref[...], w_ref[...], preferred_element_type=jnp.float32)
    h = y + b_ref[...] + r_ref[...].astype(jnp.float32)
    mu = jnp.mean(h, axis=-1, keepdims=True)
    var = jnp.mean(h * h, axis=-1, keepdims=True) - mu * mu
    o_ref[...] = ((h - mu) * jax.lax.rsqrt(var + eps) * g_ref[...]
                  + be_ref[...]).astype(o_ref.dtype)


def matmul_res_ln(x, w, b, res, gamma, beta, eps=1e-12, tm=512, vmem_limit=None):
    """LayerNorm(x @ w + b + res): attention output projection + Add&Norm."""
    M, K = x.shape
    N = w.shape[1]
    if M % tm != 0:
        tm = M
    return pl.pallas_call(
        functools.partial(_matmul_res_ln_kernel, eps=eps),
        out_shape=jax.ShapeDtypeStruct((M, N), jnp.bfloat16),
        grid=(M // tm,),
        in_specs=[
            pl.BlockSpec((tm, K), lambda i: (i, 0)),
            _const_spec((K, N), lambda i: (0, 0)),
            _const_spec((1, N), lambda i: (0, 0)),
            pl.BlockSpec((tm, N), lambda i: (i, 0)),
            _const_spec((1, N), lambda i: (0, 0)),
            _const_spec((1, N), lambda i: (0, 0)),
        ],
        out_specs=pl.BlockSpec((tm, N), lambda i: (i, 0)),
        compiler_params=pltpu.CompilerParams(
            dimension_semantics=("parallel",),
            vmem_limit_bytes=vmem_limit),
    )(x, w, b.reshape(1, N).astype(jnp.float32), res,
      gamma.reshape(1, N), beta.reshape(1, N))


def _ffn_ln_kernel(x_ref, wi_ref, bi_ref, wo_ref, bo_ref, g_ref, be_ref,
                   o_ref, *, eps):
    x = x_ref[...]                                 # [tm, H] bf16
    nc = wi_ref.shape[0]

    def body(c, acc):
        # per-chunk: gelu(x @ wi[c]) @ wo[c]; live f32 intermediate is [tm, chunk]
        h = jnp.dot(x, wi_ref[c], preferred_element_type=jnp.float32) + bi_ref[c]
        # TODO(synk): HF BERT uses exact erf GELU; tanh approximation used here.
        h = jax.nn.gelu(h, approximate=True)
        return acc + jnp.dot(h.astype(x.dtype), wo_ref[c],
                             preferred_element_type=jnp.float32)

    y0 = x.astype(jnp.float32) + bo_ref[...]       # residual + output bias
    y = jax.lax.fori_loop(0, nc, body, y0)
    mu = jnp.mean(y, axis=-1, keepdims=True)
    var = jnp.mean(y * y, axis=-1, keepdims=True) - mu * mu
    o_ref[...] = ((y - mu) * jax.lax.rsqrt(var + eps) * g_ref[...]
                  + be_ref[...]).astype(o_ref.dtype)


def ffn_res_ln(x, wi_c, bi_c, wo_c, bo, gamma, beta, eps=1e-12, tm=512,
               vmem_limit=None):
    """Fused FFN: LayerNorm(gelu(x@wi+bi)@wo + bo + x), chunked over the
    intermediate dim so the [tm, 3072] f32 tensor is never materialized."""
    M, H = x.shape
    nc, _, chunk = wi_c.shape
    if M % tm != 0:
        tm = M
    return pl.pallas_call(
        functools.partial(_ffn_ln_kernel, eps=eps),
        out_shape=jax.ShapeDtypeStruct((M, H), jnp.bfloat16),
        grid=(M // tm,),
        in_specs=[
            pl.BlockSpec((tm, H), lambda i: (i, 0)),
            _const_spec((nc, H, chunk), lambda i: (0, 0, 0)),
            _const_spec((nc, 1, chunk), lambda i: (0, 0, 0)),
            _const_spec((nc, chunk, H), lambda i: (0, 0, 0)),
            _const_spec((1, H), lambda i: (0, 0)),
            _const_spec((1, H), lambda i: (0, 0)),
            _const_spec((1, H), lambda i: (0, 0)),
        ],
        out_specs=pl.BlockSpec((tm, H), lambda i: (i, 0)),
        compiler_params=pltpu.CompilerParams(
            dimension_semantics=("parallel",),
            vmem_limit_bytes=vmem_limit),
    )(x, wi_c, bi_c, wo_c, bo.reshape(1, H).astype(jnp.float32),
      gamma.reshape(1, H), beta.reshape(1, H))


def _matmul_bias_kernel(x_ref, w_ref, b_ref, o_ref, *, act):
    y = jnp.dot(x_ref[...], w_ref[...], preferred_element_type=jnp.float32)
    y = y + b_ref[...]
    if act == "tanh":
        y = jnp.tanh(y)
    elif act == "relu":
        y = jnp.maximum(y, 0.0)
    o_ref[...] = y.astype(o_ref.dtype)


def matmul_bias(x, w, b, act="none", tm=512, out_dtype=jnp.bfloat16,
                vmem_limit=None):
    """y = act(x @ w + b); grid only over M, weight resident (full-N block)."""
    M, K = x.shape
    N = w.shape[1]
    if M % tm != 0:
        tm = M
    return pl.pallas_call(
        functools.partial(_matmul_bias_kernel, act=act),
        out_shape=jax.ShapeDtypeStruct((M, N), out_dtype),
        grid=(M // tm,),
        in_specs=[pl.BlockSpec((tm, K), lambda i: (i, 0)),
                  _const_spec((K, N), lambda i: (0, 0)),
                  _const_spec((1, N), lambda i: (0, 0))],
        out_specs=pl.BlockSpec((tm, N), lambda i: (i, 0)),
        compiler_params=pltpu.CompilerParams(
            dimension_semantics=("parallel",),
            vmem_limit_bytes=vmem_limit),
    )(x, w, b.reshape(1, N).astype(jnp.float32))


def _head_kernel(pooled_ref, extra_ref, bng_ref, bnb_ref,
                 w0a_ref, w0b_ref, b0_ref,
                 w1_ref, b1_ref, w2_ref, b2_ref, w3_ref, b3_ref,
                 wo_ref, bo_ref, o_ref, *, bn_eps):
    # BatchNorm1d(1) in training mode: batch statistics, biased variance.
    extra = extra_ref[...]                                      # [B, 1]
    mu = jnp.mean(extra, axis=0, keepdims=True)
    var = jnp.mean(jnp.square(extra - mu), axis=0, keepdims=True)
    normed = (extra - mu) * jax.lax.rsqrt(var + bn_eps)
    normed = normed * bng_ref[...] + bnb_ref[...]               # [B, 1]

    # concat([pooled, normed], 1) @ W0 == pooled @ W0[:768] + normed * W0[768:]
    x = jnp.dot(pooled_ref[...], w0a_ref[...], preferred_element_type=jnp.float32)
    x = jnp.maximum(x + normed * w0b_ref[...] + b0_ref[...], 0.0)
    x = jnp.maximum(jnp.dot(x, w1_ref[...],
                            preferred_element_type=jnp.float32) + b1_ref[...], 0.0)
    x = jnp.maximum(jnp.dot(x, w2_ref[...],
                            preferred_element_type=jnp.float32) + b2_ref[...], 0.0)
    x = jnp.maximum(jnp.dot(x, w3_ref[...],
                            preferred_element_type=jnp.float32) + b3_ref[...], 0.0)
    o_ref[...] = jnp.sum(x * wo_ref[...], axis=-1, keepdims=True) + bo_ref[...]


def mlp_head(pooled, extra, p):
    B = pooled.shape[0]
    return pl.pallas_call(
        functools.partial(_head_kernel, bn_eps=1e-5),
        out_shape=jax.ShapeDtypeStruct((B, 1), jnp.float32),
    )(pooled, extra,
      p["bn_g"].reshape(1, 1), p["bn_b"].reshape(1, 1),
      p["w0a"], p["w0b"], p["b0"].reshape(1, -1),
      p["w1"], p["b1"].reshape(1, -1),
      p["w2"], p["b2"].reshape(1, -1),
      p["w3"], p["b3"].reshape(1, -1),
      p["wo_t"], p["bo"].reshape(1, 1))


# ------------------------------ model driver -------------------------------

def bert_with_extra_feature(params, input_ids, attention_mask, extra_number):
    B, S = input_ids.shape
    H = params["hidden"]
    nH = params["num_heads"]
    dh = H // nH
    M = B * S
    vlim = _vmem_limit()

    # Embedding gather is XLA glue; pos/type adds + LayerNorm fused in-kernel.
    word = jnp.take(params["word_emb"], input_ids, axis=0)             # [B,S,H]
    pos_type = (params["pos_emb"][:S].astype(jnp.float32)
                + params["type_emb"][0][None, :].astype(jnp.float32))  # [S,H]
    x = embed_layernorm(word, pos_type, params["emb_ln_g"], params["emb_ln_b"])

    mask_bias = (1.0 - attention_mask.astype(jnp.float32)) * (-1e9)    # [B,S]

    for layer in params["layers"]:
        # fused QKV projection + attention (no [M,3H] HBM round trip)
        ctx = fused_attention(x, layer["wqkv_pm"], layer["bqkv_pm"],
                              mask_bias, nH, dh, vmem_limit=vlim)       # [B,S,H]
        # fused attn-out projection + residual + LayerNorm
        h1 = matmul_res_ln(ctx.reshape(M, H), layer["wo"], layer["bo"],
                           x.reshape(M, H), layer["ln1_g"], layer["ln1_b"],
                           vmem_limit=vlim)                             # [M,H]
        # fused FFN (I-chunked) + residual + LayerNorm
        x = ffn_res_ln(h1, layer["wi_c"], layer["bi_c"], layer["wo2_c"],
                       layer["bo2"], layer["ln2_g"], layer["ln2_b"],
                       vmem_limit=vlim).reshape(B, S, H)

    # BERT pooler: dense + tanh on the [CLS] (first token) hidden state.
    pooled = matmul_bias(x[:, 0, :], params["w_pool"], params["b_pool"],
                         act="tanh", out_dtype=jnp.float32, vmem_limit=vlim)

    if extra_number.ndim == 1:
        extra_number = extra_number[:, None]
    return mlp_head(pooled, extra_number.astype(jnp.float32), params)


# ------------------------------- parameters --------------------------------

def _pair_major_perm(H, nH, dh):
    """Column permutation taking standard [q|k|v] (head-major) wqkv layout to
    head-pair-major: per pair p -> [q_2p|q_2p+1|k_2p|k_2p+1|v_2p|v_2p+1]."""
    idx = []
    for p in range(nH // 2):
        for w in range(3):                    # q, k, v
            for hh in (2 * p, 2 * p + 1):
                base = w * H + hh * dh
                idx.extend(range(base, base + dh))
    return jnp.asarray(idx, dtype=jnp.int32)


def init_params(key, vocab=100, H=768, I=3072, nH=12, L=1, max_pos=64):
    assert H % nH == 0 and nH % 2 == 0
    dh = H // nH
    keys = iter(jax.random.split(key, 128))

    def nrm(shape, dtype=jnp.bfloat16):
        return (0.02 * jax.random.normal(next(keys), shape, jnp.float32)).astype(dtype)

    chunk = 768 if (I % 768 == 0 and I >= 768) else I
    nc = I // chunk
    perm = _pair_major_perm(H, nH, dh)

    params = {
        "hidden": H,
        "num_heads": nH,
        "word_emb": nrm((vocab, H)),
        "pos_emb": nrm((max_pos, H)),
        "type_emb": nrm((2, H)),
        "emb_ln_g": jnp.ones((H,), jnp.float32),
        "emb_ln_b": jnp.zeros((H,), jnp.float32),
        "layers": [],
        "w_pool": nrm((H, H)),
        "b_pool": jnp.zeros((H,), jnp.float32),
        # head: BatchNorm1d(1) + fc0(769->512) fc1(512->256) fc2(256->128)
        #       fc3(128->64) output(64->1); kept f32 (tiny compute)
        "bn_g": jnp.ones((1,), jnp.float32),
        "bn_b": jnp.zeros((1,), jnp.float32),
        "w0a": nrm((H, 512), jnp.float32),   # rows 0..767 of fc0 weight (transposed)
        "w0b": nrm((1, 512), jnp.float32),   # row 768 of fc0 weight (extra feature)
        "b0": jnp.zeros((512,), jnp.float32),
        "w1": nrm((512, 256), jnp.float32), "b1": jnp.zeros((256,), jnp.float32),
        "w2": nrm((256, 128), jnp.float32), "b2": jnp.zeros((128,), jnp.float32),
        "w3": nrm((128, 64), jnp.float32),  "b3": jnp.zeros((64,), jnp.float32),
        "wo_t": nrm((1, 64), jnp.float32),  "bo": jnp.zeros((1,), jnp.float32),
    }
    for _ in range(L):
        wqkv = nrm((H, 3 * H))                 # standard [q|k|v] column layout
        bqkv = jnp.zeros((3 * H,), jnp.float32)
        wi = nrm((H, I))
        bi = jnp.zeros((I,), jnp.float32)
        wo2 = nrm((I, H))
        bo2 = jnp.zeros((H,), jnp.float32)
        params["layers"].append({
            # head-pair-major QKV (128-lane aligned per-pair slices in-kernel)
            "wqkv_pm": wqkv[:, perm],
            "bqkv_pm": bqkv[perm],
            "wo": nrm((H, H)),
            "bo": jnp.zeros((H,), jnp.float32),
            "ln1_g": jnp.ones((H,), jnp.float32),
            "ln1_b": jnp.zeros((H,), jnp.float32),
            # FFN weights pre-chunked over the intermediate dimension
            "wi_c": wi.reshape(H, nc, chunk).transpose(1, 0, 2),   # [nc, H, c]
            "bi_c": bi.reshape(nc, 1, chunk),                      # [nc, 1, c]
            "wo2_c": wo2.reshape(nc, chunk, H),                    # [nc, c, H]
            "bo2": bo2,
            "ln2_g": jnp.ones((H,), jnp.float32),
            "ln2_b": jnp.zeros((H,), jnp.float32),
        })
    return params


if __name__ == "__main__":
    B, S = 2, 8
    key = jax.random.PRNGKey(0)
    kp, ki, ke = jax.random.split(key, 3)

    params = init_params(kp)
    input_ids = jax.random.randint(ki, (B, S), 0, 100, dtype=jnp.int32)
    attention_mask = jnp.ones((B, S), dtype=jnp.int32)
    extra_number = jax.random.normal(ke, (B,), jnp.float32)

    out = bert_with_extra_feature(params, input_ids, attention_mask, extra_number)
    out = jax.block_until_ready(out)
    assert out.shape == (B, 1) and out.dtype == jnp.float32
    print("KERNEL_OK")
</pallas_src>

<mosaic_0001>
module attributes {stable_mosaic.version = 11 : i64} {
  func.func @_probe(%arg0: i32, %arg1: memref<8x128xf32, #tpu.memory_space<vmem>>, %arg2: memref<8x128xf32, #tpu.memory_space<vmem>>) attributes {dimension_semantics = [#tpu.dimension_semantics<arbitrary>], iteration_bounds = array<i64: 2>, scalar_prefetch = 0 : i64, scratch_operands = 0 : i64, tpu.core_type = #tpu.core_type<tc>, window_params = [{pipeline_mode = #tpu.pipeline_mode<synchronous>, transform_indices = @transform_0, window_bounds = array<i64: 8, 128>}, {transform_indices = @transform_1, window_bounds = array<i64: 8, 128>}]} {
    %c0 = arith.constant 0 : index
    %c0_0 = arith.constant 0 : index
    %0 = vector.load %arg1[%c0, %c0_0] : memref<8x128xf32, #tpu.memory_space<vmem>>, vector<8x128xf32>
    %c0_1 = arith.constant 0 : index
    %c0_2 = arith.constant 0 : index
    %1 = vector.load %arg2[%c0_1, %c0_2] : memref<8x128xf32, #tpu.memory_space<vmem>>, vector<8x128xf32>
    tpu.vector_store %arg2[%c0_1, %c0_2], %0 {strides = array<i32>} : memref<8x128xf32, #tpu.memory_space<vmem>>, vector<8x128xf32>,
    return
  }
  func.func @transform_0(%arg0: i32) -> (i32, i32) {
    %c0_i32 = arith.constant 0 : i32
    %c0_i32_0 = arith.constant 0 : i32
    %c0_i32_1 = arith.constant 0 : i32
    return %c0_i32, %c0_i32_0 : i32, i32
  }
  func.func @transform_1(%arg0: i32) -> (i32, i32) {
    %c0_i32 = arith.constant 0 : i32
    %c0_i32_0 = arith.constant 0 : i32
    return %arg0, %c0_i32 : i32, i32
  }
}

module attributes {stable_mosaic.version = 11 : i64} {
  func.func @_emb_ln_kernel(%arg0: i32, %arg1: memref<1x8x768xbf16, #tpu.memory_space<vmem>>, %arg2: memref<8x768xf32, #tpu.memory_space<vmem>>, %arg3: memref<1x768xf32, #tpu.memory_space<vmem>>, %arg4: memref<1x768xf32, #tpu.memory_space<vmem>>, %arg5: memref<1x8x768xbf16, #tpu.memory_space<vmem>>) attributes {dimension_semantics = [#tpu.dimension_semantics<parallel>], iteration_bounds = array<i64: 2>, scalar_prefetch = 0 : i64, scratch_operands = 0 : i64, tpu.core_type = #tpu.core_type<tc>, window_params = [{transform_indices = @transform_0, window_bounds = array<i64: 1, 8, 768>}, {pipeline_mode = #tpu.pipeline_mode<synchronous>, transform_indices = @transform_1, window_bounds = array<i64: 8, 768>}, {pipeline_mode = #tpu.pipeline_mode<synchronous>, transform_indices = @transform_2, window_bounds = array<i64: 1, 768>}, {pipeline_mode = #tpu.pipeline_mode<synchronous>, transform_indices = @transform_3, window_bounds = array<i64: 1, 768>}, {transform_indices = @transform_4, window_bounds = array<i64: 1, 8, 768>}]} {
    %c0 = arith.constant 0 : index
    %c0_0 = arith.constant 0 : index
    %c0_1 = arith.constant 0 : index
    %0 = vector.load %arg1[%c0, %c0_0, %c0_1] : memref<1x8x768xbf16, #tpu.memory_space<vmem>>, vector<1x8x768xbf16>
    %1 = vector.shape_cast %0 : vector<1x8x768xbf16> to vector<8x768xbf16>
    %2 = arith.extf %1 : vector<8x768xbf16> to vector<8x768xf32>
    %c0_2 = arith.constant 0 : index
    %c0_3 = arith.constant 0 : index
    %3 = vector.load %arg2[%c0_2, %c0_3] : memref<8x768xf32, #tpu.memory_space<vmem>>, vector<8x768xf32>
    %4 = arith.addf %2, %3 : vector<8x768xf32>
    %cst = arith.constant dense<0.000000e+00> : vector<8xf32>
    %5 = vector.multi_reduction <add>, %4, %cst [1] : vector<8x768xf32> to vector<8xf32>
    %6 = vector.shape_cast %5 : vector<8xf32> to vector<8x1xf32>
    %cst_4 = arith.constant 7.680000e+02 : f32
    %7 = vector.broadcast %cst_4 : f32 to vector<8x1xf32>
    %8 = arith.divf %6, %7 : vector<8x1xf32>
    %9 = arith.mulf %4, %4 : vector<8x768xf32>
    %cst_5 = arith.constant dense<0.000000e+00> : vector<8xf32>
    %10 = vector.multi_reduction <add>, %9, %cst_5 [1] : vector<8x768xf32> to vector<8xf32>
    %11 = vector.shape_cast %10 : vector<8xf32> to vector<8x1xf32>
    %cst_6 = arith.constant 7.680000e+02 : f32
    %12 = vector.broadcast %cst_6 : f32 to vector<8x1xf32>
    %13 = arith.divf %11, %12 : vector<8x1xf32>
    %14 = arith.mulf %8, %8 : vector<8x1xf32>
    %15 = arith.subf %13, %14 : vector<8x1xf32>
    %16 = vector.broadcast %8 : vector<8x1xf32> to vector<8x768xf32>
    %17 = arith.subf %4, %16 : vector<8x768xf32>
    %cst_7 = arith.constant 9.99999996E-13 : f32
    %18 = vector.broadcast %cst_7 : f32 to vector<8x1xf32>
    %19 = arith.addf %15, %18 : vector<8x1xf32>
    %20 = math.rsqrt %19 : vector<8x1xf32>
    %21 = vector.broadcast %20 : vector<8x1xf32> to vector<8x768xf32>
    %22 = arith.mulf %17, %21 : vector<8x768xf32>
    %c0_8 = arith.constant 0 : index
    %c0_9 = arith.constant 0 : index
    %23 = vector.load %arg3[%c0_8, %c0_9] : memref<1x768xf32, #tpu.memory_space<vmem>>, vector<1x768xf32>
    %24 = vector.broadcast %23 : vector<1x768xf32> to vector<8x768xf32>
    %25 = arith.mulf %22, %24 : vector<8x768xf32>
    %c0_10 = arith.constant 0 : index
    %c0_11 = arith.constant 0 : index
    %26 = vector.load %arg4[%c0_10, %c0_11] : memref<1x768xf32, #tpu.memory_space<vmem>>, vector<1x768xf32>
    %27 = vector.broadcast %26 : vector<1x768xf32> to vector<8x768xf32>
    %28 = arith.addf %25, %27 : vector<8x768xf32>
    %29 = arith.truncf %28 : vector<8x768xf32> to vector<8x768xbf16>
    %c0_12 = arith.constant 0 : index
    %c0_13 = arith.constant 0 : index
    %c0_14 = arith.constant 0 : index
    %30 = vector.load %arg5[%c0_12, %c0_13, %c0_14] : memref<1x8x768xbf16, #tpu.memory_space<vmem>>, vector<1x8x768xbf16>
    %31 = vector.shape_cast %30 : vector<1x8x768xbf16> to vector<8x768xbf16>
    %32 = vector.shape_cast %29 : vector<8x768xbf16> to vector<1x8x768xbf16>
    tpu.vector_store %arg5[%c0_12, %c0_13, %c0_14], %32 {strides = array<i32>} : memref<1x8x768xbf16, #tpu.memory_space<vmem>>, vector<1x8x768xbf16>,
    return
  }
  func.func @transform_0(%arg0: i32) -> (i32, i32, i32) {
    %c0_i32 = arith.constant 0 : i32
    %c0_i32_0 = arith.constant 0 : i32
    %c0_i32_1 = arith.constant 0 : i32
    return %arg0, %c0_i32, %c0_i32_0 : i32, i32, i32
  }
  func.func @transform_1(%arg0: i32) -> (i32, i32) {
    %c0_i32 = arith.constant 0 : i32
    %c0_i32_0 = arith.constant 0 : i32
    %c0_i32_1 = arith.constant 0 : i32
    return %c0_i32, %c0_i32_0 : i32, i32
  }
  func.func @transform_2(%arg0: i32) -> (i32, i32) {
    %c0_i32 = arith.constant 0 : i32
    %c0_i32_0 = arith.constant 0 : i32
    %c0_i32_1 = arith.constant 0 : i32
    return %c0_i32, %c0_i32_0 : i32, i32
  }
  func.func @transform_3(%arg0: i32) -> (i32, i32) {
    %c0_i32 = arith.constant 0 : i32
    %c0_i32_0 = arith.constant 0 : i32
    %c0_i32_1 = arith.constant 0 : i32
    return %c0_i32, %c0_i32_0 : i32, i32
  }
  func.func @transform_4(%arg0: i32) -> (i32, i32, i32) {
    %c0_i32 = arith.constant 0 : i32
    %c0_i32_0 = arith.constant 0 : i32
    %c0_i32_1 = arith.constant 0 : i32
    return %arg0, %c0_i32, %c0_i32_0 : i32, i32, i32
  }
}

</mosaic_0001>

<llo_original>
// kernel: tpu_custom_call.1
$region0: #{tpu_custom_call.1}
  #allocation0 [shape = 'u32[]', space=smem, size = 0x4, offset = 0x4, fixed_abs, tag = 'smem constant byte address 0x4 - core index']
  #allocation1 [shape = 'u32[144,128]{1,0:T(1,128)}', space=vmem, size = 0x12000, scoped, tag = 'internal scratch']
  %s0 = inlined_call_operand.hbm [shape: f32[8,128], index: 0, kind: input, shape index: {}]
  %s1 = inlined_call_operand.hbm [shape: f32[16,128], index: 1, kind: output, shape index: {}]
  %s2 = sld [smem:[#allocation0]]
  $region41: #{tpu_custom_call.1} parent=0
    _
  %s4 = ssub.s32 1, %s2
  %s5 = scalar_select 0, %s4, %s2
  $region1: #{tpu_custom_call.1} parent=0
    #allocation2 [shape = 'u8[4096]{0}', space=vmem, size = 0x1000, scoped, tag = 'input window, operand 0, single buffered']
    #allocation3 [shape = 's32[2]{0}', space=sflag, size = 0x8, scoped, tag = 'scoped memory for tpu_custom_call.1']
    #allocation4 [shape = 's32[2]{0}', space=sflag, size = 0x8, scoped, tag = 'scoped memory for tpu_custom_call.1']
    #allocation5 [shape = 'u8[8192]{0}', space=vmem, size = 0x2000, scoped, tag = 'output window, operand 0']
    %6 = vsyncpa [#allocation3], 0
    %7 = vsyncpa [#allocation4], 0
    %s8 = scalar_lea.sflag [#allocation4], 1
    %9 = vsyncpa %s8, 0
    loop: start=0, step=1, limit=4
    $region2: #{tpu_custom_call.1} parent=1 // loop_pre_header
      _
    $region3: #{tpu_custom_call.1} parent=1 // loop_header
      %s11 = sphi 0, %s15
      %p12 = scmp.ge.s32.totalorder %s11, 4
      %s19 = sphi 0, %s19
      %s21 = sphi 0, %s19
      %s22 = sphi 0, %s21
      %s36 = sphi 0, %s22
      %s42 = sphi 0, %s44
      %s45 = sphi 0, %s42
      %s46 = sphi 0, %s45
      %s62 = sphi 0, %s46
    $region4: #{tpu_custom_call.1} parent=1 // loop_header_branch
      %14 = sbr.rel (%p12) target = $region8
    $region5: #{tpu_custom_call.1} parent=1 // loop_body
      %s16 = ssub.s32 %s11, 1
      %s17 = ssub.s32 %s11, 2
      %s18 = sadd.s32 %s11, 1
      %s20 = sadd.s32 %s19, 1
      %p23 = scmp.eq.s32.totalorder %s11, 1
      %p24 = scmp.ne.s32.totalorder %s19, %s21
      %p25 = scmp.eq.s32.totalorder %s11, 0
      %p26 = por %p24, %p25
      %p27 = scmp.ne.s32.totalorder %s19, %s21
      %p28 = scmp.eq.s32.totalorder %s16, 1
      %p29 = por %p27, %p28
      %p30 = scmp.ne.s32.totalorder %s21, %s22
      %p31 = scmp.eq.s32.totalorder %s16, 0
      %p32 = por %p30, %p31
      %p33 = scmp.ne.s32.totalorder %s21, %s22
      %p34 = scmp.eq.s32.totalorder %s17, 1
      %p35 = por %p33, %p34
      %p37 = scmp.ne.s32.totalorder %s22, %s36
      %p38 = scmp.eq.s32.totalorder %s17, 0
      %p39 = por %p37, %p38
      %s40 = ssub.s32 %s11, %s18
      %p41 = scmp.eq.s32.totalorder %s40, 0
      %s43 = sadd.s32 %s42, 1
      %s44 = scalar_select %p41, %s42, %s43
      %p47 = pneg %p41
      %p48 = scmp.eq.s32.totalorder %s11, 1
      %p49 = por %p47, %p48
      %p50 = scmp.ne.s32.totalorder %s42, %s45
      %p51 = scmp.eq.s32.totalorder %s11, 0
      %p52 = por %p50, %p51
      %p53 = scmp.ne.s32.totalorder %s42, %s45
      %p54 = scmp.eq.s32.totalorder %s16, 1
      %p55 = por %p53, %p54
      %p56 = scmp.ne.s32.totalorder %s45, %s46
      %p57 = scmp.eq.s32.totalorder %s16, 0
      %p58 = por %p56, %p57
      %p59 = scmp.ne.s32.totalorder %s45, %s46
      %p60 = scmp.eq.s32.totalorder %s17, 1
      %p61 = por %p59, %p60
      %p63 = scmp.ne.s32.totalorder %s46, %s62
      %p64 = scmp.eq.s32.totalorder %s17, 0
      %p65 = por %p63, %p64
      %p66 = scmp.le.s32.totalorder 1, %s11
      %p67 = scmp.lt.s32.totalorder %s11, 3
      %p68 = pnand %p66, %p67
      %p69 = pneg %p68
      // Predicated region
      $region9: #{tpu_custom_call.1} parent=5 // pred_check
        _
      $region10: #{tpu_custom_call.1} parent=5 // pred_check_branch
        %71 = sbr.rel (%p68) target = $region12
      $region11: #{tpu_custom_call.1} parent=5 // pred_region
        %s72 = ssub.s32 %s11, 1
        // Predicated region
        $region13: #{tpu_custom_call.1} parent=11 // pred_check
          %p73 = pneg %p32
        $region14: #{tpu_custom_call.1} parent=11 // pred_check_branch
          %75 = sbr.rel (%p73) target = $region16
        $region15: #{tpu_custom_call.1} parent=11 // pred_region
          %s77 = ssub.s32 128, 128
          %78 = vsyncadd [#allocation3], %s77
          %s80 = sshll.u32 [#allocation2], 4
          %s81 = int_to_ptr.vmem [resolvable:$true] %s80
          %83 = dma.hbm_to_vmem [thread:$0]  %s0, 128, %s81, [#allocation3]
        $region16: #{tpu_custom_call.1} parent=11 // pred_fallthru
          _
      $region12: #{tpu_custom_call.1} parent=5 // pred_fallthru
        _
      %p84 = scmp.lt.s32.totalorder %s11, 2
      // Predicated region
      $region17: #{tpu_custom_call.1} parent=5 // pred_check
        %p85 = pneg %p84
      $region18: #{tpu_custom_call.1} parent=5 // pred_check_branch
        %87 = sbr.rel (%p85) target = $region20
      $region19: #{tpu_custom_call.1} parent=5 // pred_region
        _
      $region20: #{tpu_custom_call.1} parent=5 // pred_fallthru
        _
      %p88 = scmp.le.s32.totalorder 1, %s11
      %p89 = scmp.lt.s32.totalorder %s11, 3
      %p90 = pnand %p88, %p89
      %p91 = pneg %p90
      // Predicated region
      $region21: #{tpu_custom_call.1} parent=5 // pred_check
        _
      $region22: #{tpu_custom_call.1} parent=5 // pred_check_branch
        %93 = sbr.rel (%p90) target = $region24
      $region23: #{tpu_custom_call.1} parent=5 // pred_region
        %s94 = ssub.s32 %s11, 1
        // Predicated region
        $region25: #{tpu_custom_call.1} parent=23 // pred_check
          %p95 = pneg %p32
        $region26: #{tpu_custom_call.1} parent=23 // pred_check_branch
          %97 = sbr.rel (%p95) target = $region28
        $region27: #{tpu_custom_call.1} parent=23 // pred_region
          %98 = dma.done [#allocation3], 128
        $region28: #{tpu_custom_call.1} parent=23 // pred_fallthru
          _
        %p99 = pneg %p32
        %p100 = pneg %p29
        %p101 = pneg %p58
        %p102 = pneg %p55
        %s103 = sand.u32 %s45, 1
        %s104 = scalar_lea.sflag [#allocation4], %s103
        %s105 = sand.u32 %s45, 1
        %s106 = smul.addr %s105, 8
        %s107 = scalar_lea.vmem [#allocation5], %s106
        %v108 = vld [vmem:[#allocation2] sm:$0xff]
        %109 = vst [vmem:[%s107] sm:$0xff] %v108
        %s110 = sand.u32 %s45, 1
        %s111 = scalar_lea.sflag [#allocation4], %s110
        %s112 = sand.u32 %s45, 1
        %s113 = smul.addr %s112, 8
        %s114 = scalar_lea.vmem [#allocation5], %s113
        // Predicated region
        $region29: #{tpu_custom_call.1} parent=23 // pred_check
          %p115 = pneg %p55
        $region30: #{tpu_custom_call.1} parent=23 // pred_check_branch
          %117 = sbr.rel (%p115) target = $region32
        $region31: #{tpu_custom_call.1} parent=23 // pred_region
          %s119 = ssub.s32 128, 128
          %120 = vsyncadd %s111, %s119
          %s121 = smul.addr %s16, 128
          %s122 = scalar_lea.hbm %s1, %s121
          %s124 = sshll.u32 %s114, 4
          %s125 = int_to_ptr.vmem [resolvable:$true] %s124
          %127 = dma.vmem_to_hbm [thread:$0]  %s125, 128, %s122, %s111
        $region32: #{tpu_custom_call.1} parent=23 // pred_fallthru
          _
      $region24: #{tpu_custom_call.1} parent=5 // pred_fallthru
        _
      %p128 = scmp.le.s32.totalorder 2, %s11
      // Predicated region
      $region33: #{tpu_custom_call.1} parent=5 // pred_check
        %p129 = pneg %p128
      $region34: #{tpu_custom_call.1} parent=5 // pred_check_branch
        %131 = sbr.rel (%p129) target = $region36
      $region35: #{tpu_custom_call.1} parent=5 // pred_region
        %s132 = ssub.s32 %s11, 2
        // Predicated region
        $region37: #{tpu_custom_call.1} parent=35 // pred_check
          %p133 = pneg %p61
        $region38: #{tpu_custom_call.1} parent=35 // pred_check_branch
          %135 = sbr.rel (%p133) target = $region40
        $region39: #{tpu_custom_call.1} parent=35 // pred_region
          %s136 = sand.u32 %s46, 1
          %s137 = scalar_lea.sflag [#allocation4], %s136
          %s138 = sand.u32 %s46, 1
          %s139 = smul.addr %s138, 8
          %s140 = scalar_lea.vmem [#allocation5], %s139
          %141 = dma.done %s137, 128
        $region40: #{tpu_custom_call.1} parent=35 // pred_fallthru
          _
      $region36: #{tpu_custom_call.1} parent=5 // pred_fallthru
        _
    $region6: #{tpu_custom_call.1} parent=1 // loop_footer
      %s15 = sadd.s32 1, %s11
    $region7: #{tpu_custom_call.1} parent=1 // loop_footer_branch
      %10 = sbr.rel target = $region3
    $region8: #{tpu_custom_call.1} parent=1 // loop_exit
      _
    %142 = vsyncpa [#allocation3], 1
    %s143 = scalar_lea.sflag [#allocation3], 1
    %144 = vsyncpa %s143, 1
    %145 = vsyncpa [#allocation4], 1
    %s146 = scalar_lea.sflag [#allocation4], 1
    %147 = vsyncpa %s146, 1

// kernel: tpu_custom_call.1
$region0: #{tpu_custom_call.1}
  #allocation0 [shape = 'u32[]', space=smem, size = 0x4, offset = 0x4, fixed_abs, tag = 'smem constant byte address 0x4 - core index']
  #allocation1 [shape = 'u32[144,128]{1,0:T(1,128)}', space=vmem, size = 0x12000, scoped, tag = 'internal scratch']
  %s0 = inlined_call_operand.hbm [shape: bf16[2,8,768], index: 0, kind: input, shape index: {}]
  %s1 = inlined_call_operand.hbm [shape: f32[8,768], index: 1, kind: input, shape index: {}]
  %s2 = inlined_call_operand.vmem [shape: f32[1,768], index: 2, kind: input, shape index: {}]
  %s3 = inlined_call_operand.hbm [shape: f32[1,768], index: 3, kind: input, shape index: {}]
  %s4 = inlined_call_operand.hbm [shape: bf16[2,8,768], index: 4, kind: output, shape index: {}]
  %s5 = sld [smem:[#allocation0]]
  $region61: #{tpu_custom_call.1} parent=0
    _
  %s7 = ssub.s32 1, %s5
  %s8 = scalar_select 0, %s7, %s5
  $region1: #{tpu_custom_call.1} parent=0
    #allocation2 [shape = 'u8[24576]{0}', space=vmem, size = 0x6000, scoped, tag = 'input window, operand 0']
    #allocation3 [shape = 's32[2]{0}', space=sflag, size = 0x8, scoped, tag = 'scoped memory for tpu_custom_call.1']
    #allocation4 [shape = 's32[2]{0}', space=sflag, size = 0x8, scoped, tag = 'scoped memory for tpu_custom_call.1']
    #allocation5 [shape = 'u8[24576]{0}', space=vmem, size = 0x6000, scoped, tag = 'input window, operand 1, single buffered']
    #allocation6 [shape = 's32[1]{0}', space=sflag, size = 0x4, scoped, tag = 'scoped memory for tpu_custom_call.1']
    #allocation7 [shape = 'u8[3072]{0}', space=vmem, size = 0xc00, scoped, tag = 'input window, operand 3, single buffered']
    #allocation8 [shape = 'u8[24576]{0}', space=vmem, size = 0x6000, scoped, tag = 'output window, operand 0']
    %9 = vsyncpa [#allocation3], 0
    %s10 = scalar_lea.sflag [#allocation3], 1
    %11 = vsyncpa %s10, 0
    %12 = vsyncpa [#allocation6], 0
    %13 = vsyncpa [#allocation4], 0
    %s14 = scalar_lea.sflag [#allocation4], 1
    %15 = vsyncpa %s14, 0
    loop: start=0, step=1, limit=4
    $region2: #{tpu_custom_call.1} parent=1 // loop_pre_header
      _
    $region3: #{tpu_custom_call.1} parent=1 // loop_header
      %s17 = sphi 0, %s21
      %p18 = scmp.ge.s32.totalorder %s17, 4
      %s27 = sphi 0, %s29
      %s30 = sphi 0, %s27
      %s31 = sphi 0, %s30
      %s47 = sphi 0, %s31
      %s51 = sphi 0, %s51
      %s53 = sphi 0, %s51
      %s54 = sphi 0, %s53
      %s68 = sphi 0, %s54
      %s72 = sphi 0, %s72
      %s74 = sphi 0, %s72
      %s75 = sphi 0, %s74
      %s89 = sphi 0, %s75
      %s93 = sphi 0, %s93
      %s95 = sphi 0, %s93
      %s96 = sphi 0, %s95
      %s110 = sphi 0, %s96
      %s116 = sphi 0, %s118
      %s119 = sphi 0, %s116
      %s120 = sphi 0, %s119
      %s136 = sphi 0, %s120
    $region4: #{tpu_custom_call.1} parent=1 // loop_header_branch
      %20 = sbr.rel (%p18) target = $region8
    $region5: #{tpu_custom_call.1} parent=1 // loop_body
      %s22 = ssub.s32 %s17, 1
      %s23 = ssub.s32 %s17, 2
      %s24 = sadd.s32 %s17, 1
      %s25 = ssub.s32 %s17, %s24
      %p26 = scmp.eq.s32.totalorder %s25, 0
      %s28 = sadd.s32 %s27, 1
      %s29 = scalar_select %p26, %s27, %s28
      %p32 = pneg %p26
      %p33 = scmp.eq.s32.totalorder %s17, 1
      %p34 = por %p32, %p33
      %p35 = scmp.ne.s32.totalorder %s27, %s30
      %p36 = scmp.eq.s32.totalorder %s17, 0
      %p37 = por %p35, %p36
      %p38 = scmp.ne.s32.totalorder %s27, %s30
      %p39 = scmp.eq.s32.totalorder %s22, 1
      %p40 = por %p38, %p39
      %p41 = scmp.ne.s32.totalorder %s30, %s31
      %p42 = scmp.eq.s32.totalorder %s22, 0
      %p43 = por %p41, %p42
      %p44 = scmp.ne.s32.totalorder %s30, %s31
      %p45 = scmp.eq.s32.totalorder %s23, 1
      %p46 = por %p44, %p45
      %p48 = scmp.ne.s32.totalorder %s31, %s47
      %p49 = scmp.eq.s32.totalorder %s23, 0
      %p50 = por %p48, %p49
      %s52 = sadd.s32 %s51, 1
      %p55 = scmp.eq.s32.totalorder %s17, 1
      %p56 = scmp.ne.s32.totalorder %s51, %s53
      %p57 = scmp.eq.s32.totalorder %s17, 0
      %p58 = por %p56, %p57
      %p59 = scmp.ne.s32.totalorder %s51, %s53
      %p60 = scmp.eq.s32.totalorder %s22, 1
      %p61 = por %p59, %p60
      %p62 = scmp.ne.s32.totalorder %s53, %s54
      %p63 = scmp.eq.s32.totalorder %s22, 0
      %p64 = por %p62, %p63
      %p65 = scmp.ne.s32.totalorder %s53, %s54
      %p66 = scmp.eq.s32.totalorder %s23, 1
      %p67 = por %p65, %p66
      %p69 = scmp.ne.s32.totalorder %s54, %s68
      %p70 = scmp.eq.s32.totalorder %s23, 0
      %p71 = por %p69, %p70
      %s73 = sadd.s32 %s72, 1
      %p76 = scmp.eq.s32.totalorder %s17, 1
      %p77 = scmp.ne.s32.totalorder %s72, %s74
      %p78 = scmp.eq.s32.totalorder %s17, 0
      %p79 = por %p77, %p78
      %p80 = scmp.ne.s32.totalorder %s72, %s74
      %p81 = scmp.eq.s32.totalorder %s22, 1
      %p82 = por %p80, %p81
      %p83 = scmp.ne.s32.totalorder %s74, %s75
      %p84 = scmp.eq.s32.totalorder %s22, 0
      %p85 = por %p83, %p84
      %p86 = scmp.ne.s32.totalorder %s74, %s75
      %p87 = scmp.eq.s32.totalorder %s23, 1
      %p88 = por %p86, %p87
      %p90 = scmp.ne.s32.totalorder %s75, %s89
      %p91 = scmp.eq.s32.totalorder %s23, 0
      %p92 = por %p90, %p91
      %s94 = sadd.s32 %s93, 1
      %p97 = scmp.eq.s32.totalorder %s17, 1
      %p98 = scmp.ne.s32.totalorder %s93, %s95
      %p99 = scmp.eq.s32.totalorder %s17, 0
      %p100 = por %p98, %p99
      %p101 = scmp.ne.s32.totalorder %s93, %s95
      %p102 = scmp.eq.s32.totalorder %s22, 1
      %p103 = por %p101, %p102
      %p104 = scmp.ne.s32.totalorder %s95, %s96
      %p105 = scmp.eq.s32.totalorder %s22, 0
      %p106 = por %p104, %p105
      %p107 = scmp.ne.s32.totalorder %s95, %s96
      %p108 = scmp.eq.s32.totalorder %s23, 1
      %p109 = por %p107, %p108
      %p111 = scmp.ne.s32.totalorder %s96, %s110
      %p112 = scmp.eq.s32.totalorder %s23, 0
      %p113 = por %p111, %p112
      %s114 = ssub.s32 %s17, %s24
      %p115 = scmp.eq.s32.totalorder %s114, 0
      %s117 = sadd.s32 %s116, 1
      %s118 = scalar_select %p115, %s116, %s117
      %p121 = pneg %p115
      %p122 = scmp.eq.s32.totalorder %s17, 1
      %p123 = por %p121, %p122
      %p124 = scmp.ne.s32.totalorder %s116, %s119
      %p125 = scmp.eq.s32.totalorder %s17, 0
      %p126 = por %p124, %p125
      %p127 = scmp.ne.s32.totalorder %s116, %s119
      %p128 = scmp.eq.s32.totalorder %s22, 1
      %p129 = por %p127, %p128
      %p130 = scmp.ne.s32.totalorder %s119, %s120
      %p131 = scmp.eq.s32.totalorder %s22, 0
      %p132 = por %p130, %p131
      %p133 = scmp.ne.s32.totalorder %s119, %s120
      %p134 = scmp.eq.s32.totalorder %s23, 1
      %p135 = por %p133, %p134
      %p137 = scmp.ne.s32.totalorder %s120, %s136
      %p138 = scmp.eq.s32.totalorder %s23, 0
      %p139 = por %p137, %p138
      %p140 = scmp.le.s32.totalorder 1, %s17
      %p141 = scmp.lt.s32.totalorder %s17, 3
      %p142 = pnand %p140, %p141
      %p143 = pneg %p142
      // Predicated region
      $region9: #{tpu_custom_call.1} parent=5 // pred_check
        _
      $region10: #{tpu_custom_call.1} parent=5 // pred_check_branch
        %145 = sbr.rel (%p142) target = $region12
      $region11: #{tpu_custom_call.1} parent=5 // pred_region
        %s146 = ssub.s32 %s17, 1
        // Predicated region
        $region13: #{tpu_custom_call.1} parent=11 // pred_check
          %p147 = pneg %p64
        $region14: #{tpu_custom_call.1} parent=11 // pred_check_branch
          %149 = sbr.rel (%p147) target = $region16
        $region15: #{tpu_custom_call.1} parent=11 // pred_region
          %s151 = ssub.s32 768, 768
          %152 = vsyncadd [#allocation6], %s151
          %s154 = sshll.u32 [#allocation5], 4
          %s155 = int_to_ptr.vmem [resolvable:$true] %s154
          %157 = dma.hbm_to_vmem [thread:$0]  %s1, 768, %s155, [#allocation6]
        $region16: #{tpu_custom_call.1} parent=11 // pred_fallthru
          _
        // Predicated region
        $region17: #{tpu_custom_call.1} parent=11 // pred_check
          %p158 = pneg %p85
        $region18: #{tpu_custom_call.1} parent=11 // pred_check_branch
          %160 = sbr.rel (%p158) target = $region20
        $region19: #{tpu_custom_call.1} parent=11 // pred_region
          _
        $region20: #{tpu_custom_call.1} parent=11 // pred_fallthru
          _
        // Predicated region
        $region21: #{tpu_custom_call.1} parent=11 // pred_check
          %p161 = pneg %p106
        $region22: #{tpu_custom_call.1} parent=11 // pred_check_branch
          %163 = sbr.rel (%p161) target = $region24
        $region23: #{tpu_custom_call.1} parent=11 // pred_region
          %s165 = ssub.s32 96, 96
          %166 = vsyncadd [#allocation6], %s165
          %s168 = sshll.u32 [#allocation7], 4
          %s169 = int_to_ptr.vmem [resolvable:$true] %s168
          %171 = dma.hbm_to_vmem [thread:$0]  %s3, 96, %s169, [#allocation6]
        $region24: #{tpu_custom_call.1} parent=11 // pred_fallthru
          _
      $region12: #{tpu_custom_call.1} parent=5 // pred_fallthru
        _
      %p172 = scmp.lt.s32.totalorder %s17, 2
      // Predicated region
      $region25: #{tpu_custom_call.1} parent=5 // pred_check
        %p173 = pneg %p172
      $region26: #{tpu_custom_call.1} parent=5 // pred_check_branch
        %175 = sbr.rel (%p173) target = $region28
      $region27: #{tpu_custom_call.1} parent=5 // pred_region
        // Predicated region
        $region29: #{tpu_custom_call.1} parent=27 // pred_check
          %p176 = pneg %p37
        $region30: #{tpu_custom_call.1} parent=27 // pred_check_branch
          %178 = sbr.rel (%p176) target = $region32
        $region31: #{tpu_custom_call.1} parent=27 // pred_region
          %s179 = sand.u32 %s27, 1
          %s180 = scalar_lea.sflag [#allocation3], %s179
          %s181 = sand.u32 %s27, 1
          %s182 = smul.addr %s181, 24
          %s183 = scalar_lea.vmem [#allocation2], %s182
          %s185 = ssub.s32 384, 384
          %186 = vsyncadd %s180, %s185
          %s187 = smul.addr %s17, 6
          %s188 = smul.addr %s187, 64
          %s189 = scalar_lea.hbm %s0, %s188
          %s191 = sshll.u32 %s183, 4
          %s192 = int_to_ptr.vmem [resolvable:$true] %s191
          %194 = dma.hbm_to_vmem [thread:$0]  %s189, 384, %s192, %s180
        $region32: #{tpu_custom_call.1} parent=27 // pred_fallthru
          _
      $region28: #{tpu_custom_call.1} parent=5 // pred_fallthru
        _
      %p195 = scmp.le.s32.totalorder 1, %s17
      %p196 = scmp.lt.s32.totalorder %s17, 3
      %p197 = pnand %p195, %p196
      %p198 = pneg %p197
      // Predicated region
      $region33: #{tpu_custom_call.1} parent=5 // pred_check
        _
      $region34: #{tpu_custom_call.1} parent=5 // pred_check_branch
        %200 = sbr.rel (%p197) target = $region36
      $region35: #{tpu_custom_call.1} parent=5 // pred_region
        %s201 = ssub.s32 %s17, 1
        %s202 = sand.u32 %s30, 1
        %s203 = scalar_lea.sflag [#allocation3], %s202
        %s204 = sand.u32 %s30, 1
        %s205 = smul.addr %s204, 24
        %s206 = scalar_lea.vmem [#allocation2], %s205
        // Predicated region
        $region37: #{tpu_custom_call.1} parent=35 // pred_check
          %p207 = pneg %p43
        $region38: #{tpu_custom_call.1} parent=35 // pred_check_branch
          %209 = sbr.rel (%p207) target = $region40
        $region39: #{tpu_custom_call.1} parent=35 // pred_region
          %210 = dma.done %s203, 384
        $region40: #{tpu_custom_call.1} parent=35 // pred_fallthru
          _
        // Predicated region
        $region41: #{tpu_custom_call.1} parent=35 // pred_check
          %p211 = pneg %p64
        $region42: #{tpu_custom_call.1} parent=35 // pred_check_branch
          %213 = sbr.rel (%p211) target = $region44
        $region43: #{tpu_custom_call.1} parent=35 // pred_region
          %214 = dma.done [#allocation6], 768
        $region44: #{tpu_custom_call.1} parent=35 // pred_fallthru
          _
        // Predicated region
        $region45: #{tpu_custom_call.1} parent=35 // pred_check
          %p215 = pneg %p106
        $region46: #{tpu_custom_call.1} parent=35 // pred_check_branch
          %217 = sbr.rel (%p215) target = $region48
        $region47: #{tpu_custom_call.1} parent=35 // pred_region
          %218 = dma.done [#allocation6], 96
        $region48: #{tpu_custom_call.1} parent=35 // pred_fallthru
          _
        %s219 = sand.u32 %s30, 1
        %s220 = scalar_lea.sflag [#allocation3], %s219
        %s221 = sand.u32 %s30, 1
        %s222 = smul.addr %s221, 24
        %s223 = scalar_lea.vmem [#allocation2], %s222
        %p224 = pneg %p43
        %p225 = pneg %p40
        %p226 = pneg %p64
        %p227 = pneg %p61
        %p228 = pneg %p85
        %p229 = pneg %p82
        %p230 = pneg %p106
        %p231 = pneg %p103
        %p232 = pneg %p132
        %p233 = pneg %p129
        %s234 = sand.u32 %s119, 1
        %s235 = scalar_lea.sflag [#allocation4], %s234
        %s236 = sand.u32 %s119, 1
        %s237 = smul.addr %s236, 24
        %s238 = scalar_lea.vmem [#allocation8], %s237
        %v239 = vld [vmem:[%s206] sm:$0xff]
        %v240 = vld [vmem:[%s206 + $0x8] sm:$0xff]
        %v241 = vld [vmem:[%s206 + $0x10] sm:$0xff]
        %v242 = vunpack.c.l.bf16 %v239
        %v243 = vunpack.c.h.bf16 %v239
        %v244 = vunpack.c.l.bf16 %v240
        %v245 = vunpack.c.h.bf16 %v240
        %v246 = vunpack.c.l.bf16 %v241
        %v247 = vunpack.c.h.bf16 %v241
        %v248 = vld [vmem:[#allocation5] sm:$0xff]
        %v249 = vld [vmem:[#allocation5 + $0x8] sm:$0xff]
        %v250 = vld [vmem:[#allocation5 + $0x10] sm:$0xff]
        %v251 = vld [vmem:[#allocation5 + $0x18] sm:$0xff]
        %v252 = vld [vmem:[#allocation5 + $0x20] sm:$0xff]
        %v253 = vld [vmem:[#allocation5 + $0x28] sm:$0xff]
        %v254 = vadd.f32 %v242, %v248
        %v255 = vadd.f32 %v243, %v249
        %v256 = vadd.f32 %v244, %v250
        %v257 = vadd.f32 %v245, %v251
        %v258 = vadd.f32 %v246, %v252
        %v259 = vadd.f32 %v247, %v253
        %v260 = vadd.f32 %v254, %v255
        %v261 = vadd.f32 %v260, %v256
        %v262 = vadd.f32 %v261, %v257
        %v263 = vadd.f32 %v262, %v258
        %v264 = vadd.f32 %v263, %v259
        %265 = vadd.xlane.f32.xlu0 %v264
        %v266 = vpop.xlane.xlu0 %265
        %v267 = vrcp.pop 768.0
        %v268 = vmul.f32 %v266, %v267
        %v269 = vmul.f32 %v254, %v254
        %v270 = vmul.f32 %v255, %v255
        %v271 = vmul.f32 %v256, %v256
        %v272 = vmul.f32 %v257, %v257
        %v273 = vmul.f32 %v258, %v258
        %v274 = vmul.f32 %v259, %v259
        %v275 = vadd.f32 %v269, %v270
        %v276 = vadd.f32 %v275, %v271
        %v277 = vadd.f32 %v276, %v272
        %v278 = vadd.f32 %v277, %v273
        %v279 = vadd.f32 %v278, %v274
        %280 = vadd.xlane.f32.xlu0 %v279
        %v281 = vpop.xlane.xlu0 %280
        %v282 = vmul.f32 %v281, %v267
        %v283 = vmul.f32 %v268, %v268
        %v284 = vsub.f32 %v282, %v283
        %v285 = vsub.f32 %v254, %v268
        %v286 = vsub.f32 %v255, %v268
        %v287 = vsub.f32 %v256, %v268
        %v288 = vsub.f32 %v257, %v268
        %v289 = vsub.f32 %v258, %v268
        %v290 = vsub.f32 %v259, %v268
        %v291 = vadd.f32 %v284, 1e-12
        %v292 = vrsqrt.pop %v291
        %v293 = vmul.f32 %v285, %v292
        %v294 = vmul.f32 %v286, %v292
        %v295 = vmul.f32 %v287, %v292
        %v296 = vmul.f32 %v288, %v292
        %v297 = vmul.f32 %v289, %v292
        %v298 = vmul.f32 %v290, %v292
        %v299 = vld [vmem:[%s2] sm:$0x3f]
        %v301 = vlaneseq
        %v302 = vshrl.u32 %v301, 7
        %v303 = vsub.s32 0, %v302
        %v304 = vrot.slane %v299, %v303
        %v305 = vlaneseq
        %v306 = vshrl.u32 %v305, 7
        %v307 = vsub.s32 1, %v306
        %v308 = vrot.slane %v299, %v307
        %v309 = vlaneseq
        %v310 = vshrl.u32 %v309, 7
        %v311 = vsub.s32 2, %v310
        %v312 = vrot.slane %v299, %v311
        %v313 = vlaneseq
        %v314 = vshrl.u32 %v313, 7
        %v315 = vsub.s32 3, %v314
        %v316 = vrot.slane %v299, %v315
        %v317 = vlaneseq
        %v318 = vshrl.u32 %v317, 7
        %v319 = vsub.s32 4, %v318
        %v320 = vrot.slane %v299, %v319
        %v321 = vlaneseq
        %v322 = vshrl.u32 %v321, 7
        %v323 = vsub.s32 5, %v322
        %v324 = vrot.slane %v299, %v323
        %v331 = vmul.f32 %v293, %v304
        %v332 = vmul.f32 %v294, %v308
        %v333 = vmul.f32 %v295, %v312
        %v334 = vmul.f32 %v296, %v316
        %v335 = vmul.f32 %v297, %v320
        %v336 = vmul.f32 %v298, %v324
        %v337 = vld [vmem:[#allocation7] sm:$0x3f]
        %v339 = vlaneseq
        %v340 = vshrl.u32 %v339, 7
        %v341 = vsub.s32 0, %v340
        %v342 = vrot.slane %v337, %v341
        %v343 = vlaneseq
        %v344 = vshrl.u32 %v343, 7
        %v345 = vsub.s32 1, %v344
        %v346 = vrot.slane %v337, %v345
        %v347 = vlaneseq
        %v348 = vshrl.u32 %v347, 7
        %v349 = vsub.s32 2, %v348
        %v350 = vrot.slane %v337, %v349
        %v351 = vlaneseq
        %v352 = vshrl.u32 %v351, 7
        %v353 = vsub.s32 3, %v352
        %v354 = vrot.slane %v337, %v353
        %v355 = vlaneseq
        %v356 = vshrl.u32 %v355, 7
        %v357 = vsub.s32 4, %v356
        %v358 = vrot.slane %v337, %v357
        %v359 = vlaneseq
        %v360 = vshrl.u32 %v359, 7
        %v361 = vsub.s32 5, %v360
        %v362 = vrot.slane %v337, %v361
        %v369 = vadd.f32 %v331, %v342
        %v370 = vadd.f32 %v332, %v346
        %v371 = vadd.f32 %v333, %v350
        %v372 = vadd.f32 %v334, %v354
        %v373 = vadd.f32 %v335, %v358
        %v374 = vadd.f32 %v336, %v362
        %v375 = vpack.c.bf16 %v369, %v369
        %v376 = vpack.c.bf16 %v370, %v370
        %v377 = vpack.c.bf16 %v371, %v371
        %v378 = vpack.c.bf16 %v372, %v372
        %v379 = vpack.c.bf16 %v373, %v373
        %v380 = vpack.c.bf16 %v374, %v374
        %v387 = vunpack.c.l.b16 %v375
        %v388 = vunpack.c.l.b16 %v376
        %v389 = vunpack.c.l.b16 %v377
        %v390 = vunpack.c.l.b16 %v378
        %v391 = vunpack.c.l.b16 %v379
        %v392 = vunpack.c.l.b16 %v380
        %v393 = vpack.c.b16 %v388, %v387
        %v394 = vpack.c.b16 %v390, %v389
        %v395 = vpack.c.b16 %v392, %v391
        %399 = vst [vmem:[%s238] sm:$0xff] %v393
        %400 = vst [vmem:[%s238 + $0x8] sm:$0xff] %v394
        %401 = vst [vmem:[%s238 + $0x10] sm:$0xff] %v395
        %s402 = sand.u32 %s119, 1
        %s403 = scalar_lea.sflag [#allocation4], %s402
        %s404 = sand.u32 %s119, 1
        %s405 = smul.addr %s404, 24
        %s406 = scalar_lea.vmem [#allocation8], %s405
        // Predicated region
        $region49: #{tpu_custom_call.1} parent=35 // pred_check
          %p407 = pneg %p129
        $region50: #{tpu_custom_call.1} parent=35 // pred_check_branch
          %409 = sbr.rel (%p407) target = $region52
        $region51: #{tpu_custom_call.1} parent=35 // pred_region
          %s411 = ssub.s32 384, 384
          %412 = vsyncadd %s403, %s411
          %s413 = smul.addr %s22, 6
          %s414 = smul.addr %s413, 64
          %s415 = scalar_lea.hbm %s4, %s414
          %s417 = sshll.u32 %s406, 4
          %s418 = int_to_ptr.vmem [resolvable:$true] %s417
          %420 = dma.vmem_to_hbm [thread:$0]  %s418, 384, %s415, %s403
        $region52: #{tpu_custom_call.1} parent=35 // pred_fallthru
          _
      $region36: #{tpu_custom_call.1} parent=5 // pred_fallthru
        _
      %p421 = scmp.le.s32.totalorder 2, %s17
      // Predicated region
      $region53: #{tpu_custom_call.1} parent=5 // pred_check
        %p422 = pneg %p421
      $region54: #{tpu_custom_call.1} parent=5 // pred_check_branch
        %424 = sbr.rel (%p422) target = $region56
      $region55: #{tpu_custom_call.1} parent=5 // pred_region
        %s425 = ssub.s32 %s17, 2
        // Predicated region
        $region57: #{tpu_custom_call.1} parent=55 // pred_check
          %p426 = pneg %p135
        $region58: #{tpu_custom_call.1} parent=55 // pred_check_branch
          %428 = sbr.rel (%p426) target = $region60
        $region59: #{tpu_custom_call.1} parent=55 // pred_region
          %s429 = sand.u32 %s120, 1
          %s430 = scalar_lea.sflag [#allocation4], %s429
          %s431 = sand.u32 %s120, 1
          %s432 = smul.addr %s431, 24
          %s433 = scalar_lea.vmem [#allocation8], %s432
          %434 = dma.done %s430, 384
        $region60: #{tpu_custom_call.1} parent=55 // pred_fallthru
          _
      $region56: #{tpu_custom_call.1} parent=5 // pred_fallthru
        _
    $region6: #{tpu_custom_call.1} parent=1 // loop_footer
      %s21 = sadd.s32 1, %s17
    $region7: #{tpu_custom_call.1} parent=1 // loop_footer_branch
      %16 = sbr.rel target = $region3
    $region8: #{tpu_custom_call.1} parent=1 // loop_exit
      _
    %435 = vsyncpa [#allocation3], 1
    %s436 = scalar_lea.sflag [#allocation3], 1
    %437 = vsyncpa %s436, 1
    %438 = vsyncpa [#allocation6], 1
    %439 = vsyncpa [#allocation4], 1
    %s440 = scalar_lea.sflag [#allocation4], 1
    %441 = vsyncpa %s440, 1

</llo_original>
